<compile_context>
chip_gen: v5e
topology: v5e:2x2
jax: 0.10.0
libtpu: 0.0.40
codegen_flags: <defaults>
</compile_context>

<pallas_src>
import functools
import math

import jax
import jax.numpy as jnp
from jax import lax
from jax.experimental import pallas as pl
from jax.experimental.pallas import tpu as pltpu

_LOG_2PI = math.log(2.0 * math.pi)
_VMEM = pl.BlockSpec(memory_space=pltpu.MemorySpace.VMEM)


# ----------------------------------------------------------------------------
# Fused Pallas kernel: whole MLPAgent forward, all intermediates VMEM-resident
# ----------------------------------------------------------------------------
def _mlp_agent_fused_kernel(
    patches_ref, cam_w_ref, cam_b_ref,          # patch embedding (both cams stacked)
    obs_ref, obs_w_ref, obs_b_ref,              # obs 'add_token' projection
    ln_g_ref, ln_b_ref,                         # post_proc LayerNorm
    w1_ref, b1_ref, w2_ref, b2_ref,             # shared MLP (Linear+ReLU) x2
    pol_w_ref, pol_b_ref, pol_logstd_ref,       # Gaussian policy head
    ac_ref, mask_ref,                           # targets + mask (batch-padded)
    loss_ref,                                   # (1,1) scalar loss output
    *, n_img_tokens, b_pad, embed_dim, eps):
  f32 = jnp.float32
  gamma = ln_g_ref[...]
  beta = ln_b_ref[...]

  def layernorm(x):                             # per-row LayerNorm over embed dim
    mean = jnp.mean(x, axis=-1, keepdims=True)
    var = jnp.mean(jnp.square(x - mean), axis=-1, keepdims=True)
    return (x - mean) * lax.rsqrt(var + eps) * gamma + beta

  # ---- embed(): both cams in ONE MXU pass; rows are token-major:
  #      row = token_idx * b_pad + batch_row  (token order: cam0 patches, cam1 patches)
  img_tok = jnp.dot(patches_ref[...], cam_w_ref[...],
                    preferred_element_type=f32) + cam_b_ref[...]
  # ---- _img_dropout / Dropout(0.2): identity in eval
  # ---- use_obs == 'add_token': obs -> Linear -> one extra token
  obs_tok = jnp.dot(obs_ref[...], obs_w_ref[...],
                    preferred_element_type=f32) + obs_b_ref[...]

  # ---- post_proc: Identity -> LayerNorm(token_dim) -> Dropout (eval id)
  img_ln = layernorm(img_tok)                   # (n_img_tokens*b_pad, E)
  obs_ln = layernorm(obs_tok)                   # (b_pad, E)

  # ---- flatten=True + shared-MLP layer 1, decomposed over tokens so the
  #      (b_pad, n_tok*E) flatten never materializes as an in-kernel reshape.
  h1 = jnp.dot(obs_ln,
               w1_ref[n_img_tokens * embed_dim:(n_img_tokens + 1) * embed_dim, :],
               preferred_element_type=f32) + b1_ref[...]
  for t in range(n_img_tokens):                 # static unroll; slices sublane-aligned
    tok_t = img_ln[t * b_pad:(t + 1) * b_pad, :]
    h1 = h1 + jnp.dot(tok_t, w1_ref[t * embed_dim:(t + 1) * embed_dim, :],
                      preferred_element_type=f32)
  h1 = jnp.maximum(h1, 0.0)                     # ReLU (Dropout eval = id)

  # ---- shared-MLP layer 2
  h2 = jnp.dot(h1, w2_ref[...], preferred_element_type=f32) + b2_ref[...]
  h2 = jnp.maximum(h2, 0.0)

  # ---- policy: diagonal Gaussian; loss = -(logp * mask).sum() / mask.sum()
  mean = jnp.dot(h2, pol_w_ref[...], preferred_element_type=f32) + pol_b_ref[...]
  log_std = pol_logstd_ref[...]                 # (1, A) broadcasts over batch rows
  z = (ac_ref[...] - mean) * jnp.exp(-log_std)
  logp = -0.5 * z * z - log_std - 0.5 * _LOG_2PI
  mask = mask_ref[...]                          # padded batch rows have mask == 0
  num = jnp.sum(logp * mask)
  den = jnp.sum(mask)                           # NOTE: all-zero mask -> inf/nan (matches PyTorch ref)
  loss_ref[...] = jnp.reshape(-(num / den), (1, 1))


# ----------------------------------------------------------------------------
# JAX glue: patchify (NCHW -> patch rows), parameter init, fused forward wrapper
# ----------------------------------------------------------------------------
def patchify_nchw(img, patch):
  """(B, C, H, W) -> (B, n_patches, C*P*P), row-major over (H/P, W/P)."""
  b, c, h, w = img.shape
  hp, wp = h // patch, w // patch
  x = img.reshape(b, c, hp, patch, wp, patch)
  x = x.transpose(0, 2, 4, 1, 3, 5)             # (B, H/P, W/P, C, P, P)
  return x.reshape(b, hp * wp, c * patch * patch)


def init_params(key, cfg):
  c, p, e = cfg["C"], cfg["patch"], cfg["embed_dim"]
  odim, ac_dim = cfg["odim"], cfg["ac_dim"]
  patch_in = c * p * p
  keys = jax.random.split(key, 10)

  def lin(k, fan_in, fan_out, scale=0.02):
    kw, kb = jax.random.split(k)
    w = scale * jax.random.normal(kw, (fan_in, fan_out), jnp.float32)
    b = scale * jax.random.normal(kb, (fan_out,), jnp.float32)
    return w, b

  # visual_features: deepcopy(features) => identical init weights per cam
  cam_w, cam_b = lin(keys[0], patch_in, e)
  cam_embed = [(cam_w, cam_b) for _ in range(cfg["n_cams"])]

  obs_w, obs_b = lin(keys[1], odim, e)          # _obs_proc Linear
  ln_gamma = jnp.ones((e,), jnp.float32)        # nn.LayerNorm(token_dim)
  ln_beta = jnp.zeros((e,), jnp.float32)

  mlp_in = cfg["n_tokens"] * e
  mlp_def = [mlp_in] + cfg["shared_mlp"]
  mlp = [lin(keys[2 + i], i_dim, o_dim)
         for i, (i_dim, o_dim) in enumerate(zip(mlp_def[:-1], mlp_def[1:]))]

  pol_w, pol_b = lin(keys[8], cfg["shared_mlp"][-1], ac_dim)
  pol_log_std = jnp.full((ac_dim,), -0.5, jnp.float32)

  return {
      "cam_embed": cam_embed,
      "obs_proj": (obs_w, obs_b),
      "ln": (ln_gamma, ln_beta),
      "mlp": mlp,
      "policy": (pol_w, pol_b, pol_log_std),
  }


def mlp_agent_forward(params, imgs, obs, ac_flat, mask_flat, cfg):
  b = obs.shape[0]
  e = cfg["embed_dim"]
  p = cfg["patch"]
  n_cams = cfg["n_cams"]
  b_pad = -(-b // 8) * 8                        # pad batch rows to a sublane multiple

  # ---- patchify each cam (XLA layout glue only), stack cams along the token axis,
  #      go token-major and pad batch rows so every in-kernel slice is tile-aligned.
  cams = [patchify_nchw(imgs[f"cam{i}"], p) for i in range(n_cams)]   # (B, tok/cam, CPP)
  patches = jnp.concatenate(cams, axis=1)                             # (B, n_img_tok, CPP)
  n_img_tok = patches.shape[1]
  cpp = patches.shape[2]
  patches = jnp.transpose(patches, (1, 0, 2))                         # (n_img_tok, B, CPP)
  patches = jnp.pad(patches, ((0, 0), (0, b_pad - b), (0, 0)))
  patches = patches.reshape(n_img_tok * b_pad, cpp)                   # token-major rows

  pad_rows = lambda x: jnp.pad(x, ((0, b_pad - b), (0, 0)))
  obs_p, ac_p, mask_p = pad_rows(obs), pad_rows(ac_flat), pad_rows(mask_flat)

  cam_w, cam_b = params["cam_embed"][0]         # identical across cams (deepcopy init)
  obs_w, obs_b = params["obs_proj"]
  gamma, beta = params["ln"]
  (w1, b1), (w2, b2) = params["mlp"]            # shared_mlp = [64, 32]
  pol_w, pol_b, pol_log_std = params["policy"]

  inputs = (
      patches, cam_w, cam_b.reshape(1, -1),
      obs_p, obs_w, obs_b.reshape(1, -1),
      gamma.reshape(1, -1), beta.reshape(1, -1),
      w1, b1.reshape(1, -1), w2, b2.reshape(1, -1),
      pol_w, pol_b.reshape(1, -1), pol_log_std.reshape(1, -1),
      ac_p, mask_p,
  )

  flops = 2 * (patches.shape[0] * cpp * e
               + b_pad * obs.shape[1] * e
               + (n_img_tok + 1) * b_pad * e * w1.shape[1]
               + b_pad * w2.shape[0] * w2.shape[1]
               + b_pad * pol_w.shape[0] * pol_w.shape[1])
  bytes_accessed = sum(int(x.size) * x.dtype.itemsize for x in inputs) + 4
  transcendentals = patches.shape[0] + b_pad + int(pol_log_std.size)  # rsqrt rows + exp

  out = pl.pallas_call(
      functools.partial(_mlp_agent_fused_kernel, n_img_tokens=n_img_tok,
                        b_pad=b_pad, embed_dim=e, eps=1e-5),
      out_shape=jax.ShapeDtypeStruct((1, 1), jnp.float32),
      in_specs=[_VMEM] * len(inputs),
      out_specs=_VMEM,                          # scalar loss = the ONLY kernel output
      cost_estimate=pl.CostEstimate(flops=int(flops),
                                    transcendentals=int(transcendentals),
                                    bytes_accessed=int(bytes_accessed)),
  )(*inputs)
  return out[0, 0]


# ----------------------------------------------------------------------------
if __name__ == "__main__":
  cfg = {
      "B": 2, "C": 4, "H": 16, "W": 16, "patch": 8,
      "embed_dim": 32, "n_cams": 2, "odim": 8,
      "shared_mlp": [64, 32], "ac_dim": 6,
  }
  tokens_per_cam = (cfg["H"] // cfg["patch"]) * (cfg["W"] // cfg["patch"])   # 4
  cfg["n_tokens"] = cfg["n_cams"] * tokens_per_cam + 1                       # +obs token

  key = jax.random.PRNGKey(0)
  k_par, k_c0, k_c1, k_obs, k_ac, k_mask = jax.random.split(key, 6)

  params = init_params(k_par, cfg)
  imgs = {
      "cam0": jax.random.normal(k_c0, (cfg["B"], cfg["C"], cfg["H"], cfg["W"]), jnp.float32),
      "cam1": jax.random.normal(k_c1, (cfg["B"], cfg["C"], cfg["H"], cfg["W"]), jnp.float32),
  }
  obs = jax.random.normal(k_obs, (cfg["B"], cfg["odim"]), jnp.float32)
  ac_flat = jax.random.normal(k_ac, (cfg["B"], cfg["ac_dim"]), jnp.float32)
  mask_flat = (jax.random.uniform(k_mask, (cfg["B"], cfg["ac_dim"])) > 0.3).astype(jnp.float32)

  forward = jax.jit(functools.partial(mlp_agent_forward, cfg=cfg))
  loss = forward(params, imgs, obs, ac_flat, mask_flat)
  jax.block_until_ready(loss)
  assert loss.shape == () and jnp.isfinite(loss)
  print("KERNEL_OK")
</pallas_src>

<mosaic_0001>
module attributes {stable_mosaic.version = 11 : i64} {
  func.func @_mlp_agent_fused_kernel(%arg0: memref<64x256xf32, #tpu.memory_space<vmem>>, %arg1: memref<256x32xf32, #tpu.memory_space<vmem>>, %arg2: memref<1x32xf32, #tpu.memory_space<vmem>>, %arg3: memref<8x8xf32, #tpu.memory_space<vmem>>, %arg4: memref<8x32xf32, #tpu.memory_space<vmem>>, %arg5: memref<1x32xf32, #tpu.memory_space<vmem>>, %arg6: memref<1x32xf32, #tpu.memory_space<vmem>>, %arg7: memref<1x32xf32, #tpu.memory_space<vmem>>, %arg8: memref<288x64xf32, #tpu.memory_space<vmem>>, %arg9: memref<1x64xf32, #tpu.memory_space<vmem>>, %arg10: memref<64x32xf32, #tpu.memory_space<vmem>>, %arg11: memref<1x32xf32, #tpu.memory_space<vmem>>, %arg12: memref<32x6xf32, #tpu.memory_space<vmem>>, %arg13: memref<1x6xf32, #tpu.memory_space<vmem>>, %arg14: memref<1x6xf32, #tpu.memory_space<vmem>>, %arg15: memref<8x6xf32, #tpu.memory_space<vmem>>, %arg16: memref<8x6xf32, #tpu.memory_space<vmem>>, %arg17: memref<1x1xf32, #tpu.memory_space<vmem>>) attributes {dimension_semantics = [], scalar_prefetch = 0 : i64, scratch_operands = 0 : i64, tpu.core_type = #tpu.core_type<tc>} {
    %c0 = arith.constant 0 : index
    %c0_0 = arith.constant 0 : index
    %0 = vector.load %arg6[%c0, %c0_0] : memref<1x32xf32, #tpu.memory_space<vmem>>, vector<1x32xf32>
    %c0_1 = arith.constant 0 : index
    %c0_2 = arith.constant 0 : index
    %1 = vector.load %arg7[%c0_1, %c0_2] : memref<1x32xf32, #tpu.memory_space<vmem>>, vector<1x32xf32>
    %c0_3 = arith.constant 0 : index
    %c0_4 = arith.constant 0 : index
    %2 = vector.load %arg0[%c0_3, %c0_4] : memref<64x256xf32, #tpu.memory_space<vmem>>, vector<64x256xf32>
    %c0_5 = arith.constant 0 : index
    %c0_6 = arith.constant 0 : index
    %3 = vector.load %arg1[%c0_5, %c0_6] : memref<256x32xf32, #tpu.memory_space<vmem>>, vector<256x32xf32>
    %cst = arith.constant dense<0.000000e+00> : vector<64x32xf32>
    %4 = tpu.matmul %2, %3, %cst {dimension_numbers = #tpu.dot_dimension_numbers<[1], [0], [0], [1], [0, 0, 1, 1], [], []>} : vector<64x256xf32>, vector<256x32xf32>, vector<64x32xf32> -> vector<64x32xf32>
    %c0_7 = arith.constant 0 : index
    %c0_8 = arith.constant 0 : index
    %5 = vector.load %arg2[%c0_7, %c0_8] : memref<1x32xf32, #tpu.memory_space<vmem>>, vector<1x32xf32>
    %6 = vector.broadcast %5 : vector<1x32xf32> to vector<64x32xf32>
    %7 = arith.addf %4, %6 : vector<64x32xf32>
    %c0_9 = arith.constant 0 : index
    %c0_10 = arith.constant 0 : index
    %8 = vector.load %arg3[%c0_9, %c0_10] : memref<8x8xf32, #tpu.memory_space<vmem>>, vector<8x8xf32>
    %c0_11 = arith.constant 0 : index
    %c0_12 = arith.constant 0 : index
    %9 = vector.load %arg4[%c0_11, %c0_12] : memref<8x32xf32, #tpu.memory_space<vmem>>, vector<8x32xf32>
    %cst_13 = arith.constant dense<0.000000e+00> : vector<8x32xf32>
    %10 = tpu.matmul %8, %9, %cst_13 {dimension_numbers = #tpu.dot_dimension_numbers<[1], [0], [0], [1], [0, 0, 1, 1], [], []>} : vector<8x8xf32>, vector<8x32xf32>, vector<8x32xf32> -> vector<8x32xf32>
    %c0_14 = arith.constant 0 : index
    %c0_15 = arith.constant 0 : index
    %11 = vector.load %arg5[%c0_14, %c0_15] : memref<1x32xf32, #tpu.memory_space<vmem>>, vector<1x32xf32>
    %12 = vector.broadcast %11 : vector<1x32xf32> to vector<8x32xf32>
    %13 = arith.addf %10, %12 : vector<8x32xf32>
    %cst_16 = arith.constant dense<0.000000e+00> : vector<64xf32>
    %14 = vector.multi_reduction <add>, %7, %cst_16 [1] : vector<64x32xf32> to vector<64xf32>
    %15 = vector.shape_cast %14 : vector<64xf32> to vector<64x1xf32>
    %cst_17 = arith.constant 3.200000e+01 : f32
    %16 = vector.broadcast %cst_17 : f32 to vector<64x1xf32>
    %17 = arith.divf %15, %16 : vector<64x1xf32>
    %18 = vector.broadcast %17 : vector<64x1xf32> to vector<64x32xf32>
    %19 = arith.subf %7, %18 : vector<64x32xf32>
    %20 = arith.mulf %19, %19 : vector<64x32xf32>
    %cst_18 = arith.constant dense<0.000000e+00> : vector<64xf32>
    %21 = vector.multi_reduction <add>, %20, %cst_18 [1] : vector<64x32xf32> to vector<64xf32>
    %22 = vector.shape_cast %21 : vector<64xf32> to vector<64x1xf32>
    %cst_19 = arith.constant 3.200000e+01 : f32
    %23 = vector.broadcast %cst_19 : f32 to vector<64x1xf32>
    %24 = arith.divf %22, %23 : vector<64x1xf32>
    %25 = vector.broadcast %17 : vector<64x1xf32> to vector<64x32xf32>
    %26 = arith.subf %7, %25 : vector<64x32xf32>
    %cst_20 = arith.constant 9.99999974E-6 : f32
    %27 = vector.broadcast %cst_20 : f32 to vector<64x1xf32>
    %28 = arith.addf %24, %27 : vector<64x1xf32>
    %29 = math.rsqrt %28 : vector<64x1xf32>
    %30 = vector.broadcast %29 : vector<64x1xf32> to vector<64x32xf32>
    %31 = arith.mulf %26, %30 : vector<64x32xf32>
    %32 = vector.broadcast %0 : vector<1x32xf32> to vector<64x32xf32>
    %33 = arith.mulf %31, %32 : vector<64x32xf32>
    %34 = vector.broadcast %1 : vector<1x32xf32> to vector<64x32xf32>
    %35 = arith.addf %33, %34 : vector<64x32xf32>
    %cst_21 = arith.constant dense<0.000000e+00> : vector<8xf32>
    %36 = vector.multi_reduction <add>, %13, %cst_21 [1] : vector<8x32xf32> to vector<8xf32>
    %37 = vector.shape_cast %36 : vector<8xf32> to vector<8x1xf32>
    %cst_22 = arith.constant 3.200000e+01 : f32
    %38 = vector.broadcast %cst_22 : f32 to vector<8x1xf32>
    %39 = arith.divf %37, %38 : vector<8x1xf32>
    %40 = vector.broadcast %39 : vector<8x1xf32> to vector<8x32xf32>
    %41 = arith.subf %13, %40 : vector<8x32xf32>
    %42 = arith.mulf %41, %41 : vector<8x32xf32>
    %cst_23 = arith.constant dense<0.000000e+00> : vector<8xf32>
    %43 = vector.multi_reduction <add>, %42, %cst_23 [1] : vector<8x32xf32> to vector<8xf32>
    %44 = vector.shape_cast %43 : vector<8xf32> to vector<8x1xf32>
    %cst_24 = arith.constant 3.200000e+01 : f32
    %45 = vector.broadcast %cst_24 : f32 to vector<8x1xf32>
    %46 = arith.divf %44, %45 : vector<8x1xf32>
    %47 = vector.broadcast %39 : vector<8x1xf32> to vector<8x32xf32>
    %48 = arith.subf %13, %47 : vector<8x32xf32>
    %cst_25 = arith.constant 9.99999974E-6 : f32
    %49 = vector.broadcast %cst_25 : f32 to vector<8x1xf32>
    %50 = arith.addf %46, %49 : vector<8x1xf32>
    %51 = math.rsqrt %50 : vector<8x1xf32>
    %52 = vector.broadcast %51 : vector<8x1xf32> to vector<8x32xf32>
    %53 = arith.mulf %48, %52 : vector<8x32xf32>
    %54 = vector.broadcast %0 : vector<1x32xf32> to vector<8x32xf32>
    %55 = arith.mulf %53, %54 : vector<8x32xf32>
    %56 = vector.broadcast %1 : vector<1x32xf32> to vector<8x32xf32>
    %57 = arith.addf %55, %56 : vector<8x32xf32>
    %c256 = arith.constant 256 : index
    %c0_26 = arith.constant 0 : index
    %58 = vector.load %arg8[%c256, %c0_26] : memref<288x64xf32, #tpu.memory_space<vmem>>, vector<32x64xf32>
    %cst_27 = arith.constant dense<0.000000e+00> : vector<8x64xf32>
    %59 = tpu.matmul %57, %58, %cst_27 {dimension_numbers = #tpu.dot_dimension_numbers<[1], [0], [0], [1], [0, 0, 1, 1], [], []>} : vector<8x32xf32>, vector<32x64xf32>, vector<8x64xf32> -> vector<8x64xf32>
    %c0_28 = arith.constant 0 : index
    %c0_29 = arith.constant 0 : index
    %60 = vector.load %arg9[%c0_28, %c0_29] : memref<1x64xf32, #tpu.memory_space<vmem>>, vector<1x64xf32>
    %61 = vector.broadcast %60 : vector<1x64xf32> to vector<8x64xf32>
    %62 = arith.addf %59, %61 : vector<8x64xf32>
    %63 = vector.extract_strided_slice %35 {offsets = [0, 0], sizes = [8, 32], strides = [1, 1]} : vector<64x32xf32> to vector<8x32xf32>
    %c0_30 = arith.constant 0 : index
    %c0_31 = arith.constant 0 : index
    %64 = vector.load %arg8[%c0_30, %c0_31] : memref<288x64xf32, #tpu.memory_space<vmem>>, vector<32x64xf32>
    %cst_32 = arith.constant dense<0.000000e+00> : vector<8x64xf32>
    %65 = tpu.matmul %63, %64, %cst_32 {dimension_numbers = #tpu.dot_dimension_numbers<[1], [0], [0], [1], [0, 0, 1, 1], [], []>} : vector<8x32xf32>, vector<32x64xf32>, vector<8x64xf32> -> vector<8x64xf32>
    %66 = arith.addf %62, %65 : vector<8x64xf32>
    %67 = vector.extract_strided_slice %35 {offsets = [8, 0], sizes = [8, 32], strides = [1, 1]} : vector<64x32xf32> to vector<8x32xf32>
    %c32 = arith.constant 32 : index
    %c0_33 = arith.constant 0 : index
    %68 = vector.load %arg8[%c32, %c0_33] : memref<288x64xf32, #tpu.memory_space<vmem>>, vector<32x64xf32>
    %cst_34 = arith.constant dense<0.000000e+00> : vector<8x64xf32>
    %69 = tpu.matmul %67, %68, %cst_34 {dimension_numbers = #tpu.dot_dimension_numbers<[1], [0], [0], [1], [0, 0, 1, 1], [], []>} : vector<8x32xf32>, vector<32x64xf32>, vector<8x64xf32> -> vector<8x64xf32>
    %70 = arith.addf %66, %69 : vector<8x64xf32>
    %71 = vector.extract_strided_slice %35 {offsets = [16, 0], sizes = [8, 32], strides = [1, 1]} : vector<64x32xf32> to vector<8x32xf32>
    %c64 = arith.constant 64 : index
    %c0_35 = arith.constant 0 : index
    %72 = vector.load %arg8[%c64, %c0_35] : memref<288x64xf32, #tpu.memory_space<vmem>>, vector<32x64xf32>
    %cst_36 = arith.constant dense<0.000000e+00> : vector<8x64xf32>
    %73 = tpu.matmul %71, %72, %cst_36 {dimension_numbers = #tpu.dot_dimension_numbers<[1], [0], [0], [1], [0, 0, 1, 1], [], []>} : vector<8x32xf32>, vector<32x64xf32>, vector<8x64xf32> -> vector<8x64xf32>
    %74 = arith.addf %70, %73 : vector<8x64xf32>
    %75 = vector.extract_strided_slice %35 {offsets = [24, 0], sizes = [8, 32], strides = [1, 1]} : vector<64x32xf32> to vector<8x32xf32>
    %c96 = arith.constant 96 : index
    %c0_37 = arith.constant 0 : index
    %76 = vector.load %arg8[%c96, %c0_37] : memref<288x64xf32, #tpu.memory_space<vmem>>, vector<32x64xf32>
    %cst_38 = arith.constant dense<0.000000e+00> : vector<8x64xf32>
    %77 = tpu.matmul %75, %76, %cst_38 {dimension_numbers = #tpu.dot_dimension_numbers<[1], [0], [0], [1], [0, 0, 1, 1], [], []>} : vector<8x32xf32>, vector<32x64xf32>, vector<8x64xf32> -> vector<8x64xf32>
    %78 = arith.addf %74, %77 : vector<8x64xf32>
    %79 = vector.extract_strided_slice %35 {offsets = [32, 0], sizes = [8, 32], strides = [1, 1]} : vector<64x32xf32> to vector<8x32xf32>
    %c128 = arith.constant 128 : index
    %c0_39 = arith.constant 0 : index
    %80 = vector.load %arg8[%c128, %c0_39] : memref<288x64xf32, #tpu.memory_space<vmem>>, vector<32x64xf32>
    %cst_40 = arith.constant dense<0.000000e+00> : vector<8x64xf32>
    %81 = tpu.matmul %79, %80, %cst_40 {dimension_numbers = #tpu.dot_dimension_numbers<[1], [0], [0], [1], [0, 0, 1, 1], [], []>} : vector<8x32xf32>, vector<32x64xf32>, vector<8x64xf32> -> vector<8x64xf32>
    %82 = arith.addf %78, %81 : vector<8x64xf32>
    %83 = vector.extract_strided_slice %35 {offsets = [40, 0], sizes = [8, 32], strides = [1, 1]} : vector<64x32xf32> to vector<8x32xf32>
    %c160 = arith.constant 160 : index
    %c0_41 = arith.constant 0 : index
    %84 = vector.load %arg8[%c160, %c0_41] : memref<288x64xf32, #tpu.memory_space<vmem>>, vector<32x64xf32>
    %cst_42 = arith.constant dense<0.000000e+00> : vector<8x64xf32>
    %85 = tpu.matmul %83, %84, %cst_42 {dimension_numbers = #tpu.dot_dimension_numbers<[1], [0], [0], [1], [0, 0, 1, 1], [], []>} : vector<8x32xf32>, vector<32x64xf32>, vector<8x64xf32> -> vector<8x64xf32>
    %86 = arith.addf %82, %85 : vector<8x64xf32>
    %87 = vector.extract_strided_slice %35 {offsets = [48, 0], sizes = [8, 32], strides = [1, 1]} : vector<64x32xf32> to vector<8x32xf32>
    %c192 = arith.constant 192 : index
    %c0_43 = arith.constant 0 : index
    %88 = vector.load %arg8[%c192, %c0_43] : memref<288x64xf32, #tpu.memory_space<vmem>>, vector<32x64xf32>
    %cst_44 = arith.constant dense<0.000000e+00> : vector<8x64xf32>
    %89 = tpu.matmul %87, %88, %cst_44 {dimension_numbers = #tpu.dot_dimension_numbers<[1], [0], [0], [1], [0, 0, 1, 1], [], []>} : vector<8x32xf32>, vector<32x64xf32>, vector<8x64xf32> -> vector<8x64xf32>
    %90 = arith.addf %86, %89 : vector<8x64xf32>
    %91 = vector.extract_strided_slice %35 {offsets = [56, 0], sizes = [8, 32], strides = [1, 1]} : vector<64x32xf32> to vector<8x32xf32>
    %c224 = arith.constant 224 : index
    %c0_45 = arith.constant 0 : index
    %92 = vector.load %arg8[%c224, %c0_45] : memref<288x64xf32, #tpu.memory_space<vmem>>, vector<32x64xf32>
    %cst_46 = arith.constant dense<0.000000e+00> : vector<8x64xf32>
    %93 = tpu.matmul %91, %92, %cst_46 {dimension_numbers = #tpu.dot_dimension_numbers<[1], [0], [0], [1], [0, 0, 1, 1], [], []>} : vector<8x32xf32>, vector<32x64xf32>, vector<8x64xf32> -> vector<8x64xf32>
    %94 = arith.addf %90, %93 : vector<8x64xf32>
    %cst_47 = arith.constant 0.000000e+00 : f32
    %95 = vector.broadcast %cst_47 : f32 to vector<8x64xf32>
    %96 = arith.maximumf %94, %95 : vector<8x64xf32>
    %c0_48 = arith.constant 0 : index
    %c0_49 = arith.constant 0 : index
    %97 = vector.load %arg10[%c0_48, %c0_49] : memref<64x32xf32, #tpu.memory_space<vmem>>, vector<64x32xf32>
    %cst_50 = arith.constant dense<0.000000e+00> : vector<8x32xf32>
    %98 = tpu.matmul %96, %97, %cst_50 {dimension_numbers = #tpu.dot_dimension_numbers<[1], [0], [0], [1], [0, 0, 1, 1], [], []>} : vector<8x64xf32>, vector<64x32xf32>, vector<8x32xf32> -> vector<8x32xf32>
    %c0_51 = arith.constant 0 : index
    %c0_52 = arith.constant 0 : index
    %99 = vector.load %arg11[%c0_51, %c0_52] : memref<1x32xf32, #tpu.memory_space<vmem>>, vector<1x32xf32>
    %100 = vector.broadcast %99 : vector<1x32xf32> to vector<8x32xf32>
    %101 = arith.addf %98, %100 : vector<8x32xf32>
    %cst_53 = arith.constant 0.000000e+00 : f32
    %102 = vector.broadcast %cst_53 : f32 to vector<8x32xf32>
    %103 = arith.maximumf %101, %102 : vector<8x32xf32>
    %c0_54 = arith.constant 0 : index
    %c0_55 = arith.constant 0 : index
    %104 = vector.load %arg12[%c0_54, %c0_55] : memref<32x6xf32, #tpu.memory_space<vmem>>, vector<32x6xf32>
    %cst_56 = arith.constant dense<0.000000e+00> : vector<8x6xf32>
    %105 = tpu.matmul %103, %104, %cst_56 {dimension_numbers = #tpu.dot_dimension_numbers<[1], [0], [0], [1], [0, 0, 1, 1], [], []>} : vector<8x32xf32>, vector<32x6xf32>, vector<8x6xf32> -> vector<8x6xf32>
    %c0_57 = arith.constant 0 : index
    %c0_58 = arith.constant 0 : index
    %106 = vector.load %arg13[%c0_57, %c0_58] : memref<1x6xf32, #tpu.memory_space<vmem>>, vector<1x6xf32>
    %107 = vector.broadcast %106 : vector<1x6xf32> to vector<8x6xf32>
    %108 = arith.addf %105, %107 : vector<8x6xf32>
    %c0_59 = arith.constant 0 : index
    %c0_60 = arith.constant 0 : index
    %109 = vector.load %arg14[%c0_59, %c0_60] : memref<1x6xf32, #tpu.memory_space<vmem>>, vector<1x6xf32>
    %c0_61 = arith.constant 0 : index
    %c0_62 = arith.constant 0 : index
    %110 = vector.load %arg15[%c0_61, %c0_62] : memref<8x6xf32, #tpu.memory_space<vmem>>, vector<8x6xf32>
    %111 = arith.subf %110, %108 : vector<8x6xf32>
    %cst_63 = arith.constant 0.000000e+00 : f32
    %112 = vector.broadcast %cst_63 : f32 to vector<1x6xf32>
    %113 = arith.subf %112, %109 : vector<1x6xf32>
    %114 = math.exp %113 : vector<1x6xf32>
    %115 = vector.broadcast %114 : vector<1x6xf32> to vector<8x6xf32>
    %116 = arith.mulf %111, %115 : vector<8x6xf32>
    %cst_64 = arith.constant -5.000000e-01 : f32
    %117 = vector.broadcast %cst_64 : f32 to vector<8x6xf32>
    %118 = arith.mulf %117, %116 : vector<8x6xf32>
    %119 = arith.mulf %118, %116 : vector<8x6xf32>
    %120 = vector.broadcast %109 : vector<1x6xf32> to vector<8x6xf32>
    %121 = arith.subf %119, %120 : vector<8x6xf32>
    %cst_65 = arith.constant 0.918938517 : f32
    %122 = vector.broadcast %cst_65 : f32 to vector<8x6xf32>
    %123 = arith.subf %121, %122 : vector<8x6xf32>
    %c0_66 = arith.constant 0 : index
    %c0_67 = arith.constant 0 : index
    %124 = vector.load %arg16[%c0_66, %c0_67] : memref<8x6xf32, #tpu.memory_space<vmem>>, vector<8x6xf32>
    %125 = arith.mulf %123, %124 : vector<8x6xf32>
    %126 = vector.shape_cast %125 : vector<8x6xf32> to vector<1x8x6xf32>
    %cst_68 = arith.constant dense<0.000000e+00> : vector<1xf32>
    %127 = vector.multi_reduction <add>, %126, %cst_68 [1, 2] : vector<1x8x6xf32> to vector<1xf32>
    %128 = vector.shape_cast %127 : vector<1xf32> to vector<1x1x1xf32>
    %129 = vector.extract %128[0, 0, 0] : f32 from vector<1x1x1xf32>
    %130 = vector.shape_cast %124 : vector<8x6xf32> to vector<1x8x6xf32>
    %cst_69 = arith.constant dense<0.000000e+00> : vector<1xf32>
    %131 = vector.multi_reduction <add>, %130, %cst_69 [1, 2] : vector<1x8x6xf32> to vector<1xf32>
    %132 = vector.shape_cast %131 : vector<1xf32> to vector<1x1x1xf32>
    %133 = vector.extract %132[0, 0, 0] : f32 from vector<1x1x1xf32>
    %134 = arith.divf %129, %133 : f32
    %cst_70 = arith.constant 0.000000e+00 : f32
    %135 = arith.subf %cst_70, %134 : f32
    %136 = vector.broadcast %135 : f32 to vector<1x1xf32>
    %c0_71 = arith.constant 0 : index
    %c0_72 = arith.constant 0 : index
    %137 = vector.load %arg17[%c0_71, %c0_72] : memref<1x1xf32, #tpu.memory_space<vmem>>, vector<1x1xf32>
    tpu.vector_store %arg17[%c0_71, %c0_72], %136 {strides = array<i32>} : memref<1x1xf32, #tpu.memory_space<vmem>>, vector<1x1xf32>,
    return
  }
}

</mosaic_0001>

<llo_original>
// kernel: mlp_agent_forward.1
$region0: #{mlp_agent_forward.1}
  #allocation0 [shape = 'u32[]', space=smem, size = 0x4, offset = 0x4, fixed_abs, tag = 'smem constant byte address 0x4 - core index']
  #allocation1 [shape = 'u32[72,128]{1,0:T(1,128)}', space=vmem, size = 0x9000, scoped, tag = 'internal scratch']
  %s0 = inlined_call_operand.vmem [shape: f32[64,256], index: 0, kind: input, shape index: {}]
  %s1 = inlined_call_operand.vmem [shape: f32[256,32], index: 1, kind: input, shape index: {}]
  %s2 = inlined_call_operand.vmem [shape: f32[1,32], index: 2, kind: input, shape index: {}]
  %s3 = inlined_call_operand.vmem [shape: f32[8,8], index: 3, kind: input, shape index: {}]
  %s4 = inlined_call_operand.vmem [shape: f32[8,32], index: 4, kind: input, shape index: {}]
  %s5 = inlined_call_operand.vmem [shape: f32[1,32], index: 5, kind: input, shape index: {}]
  %s6 = inlined_call_operand.vmem [shape: f32[1,32], index: 6, kind: input, shape index: {}]
  %s7 = inlined_call_operand.vmem [shape: f32[1,32], index: 7, kind: input, shape index: {}]
  %s8 = inlined_call_operand.vmem [shape: f32[288,64], index: 8, kind: input, shape index: {}]
  %s9 = inlined_call_operand.vmem [shape: f32[1,64], index: 9, kind: input, shape index: {}]
  %s10 = inlined_call_operand.vmem [shape: f32[64,32], index: 10, kind: input, shape index: {}]
  %s11 = inlined_call_operand.vmem [shape: f32[1,32], index: 11, kind: input, shape index: {}]
  %s12 = inlined_call_operand.vmem [shape: f32[32,6], index: 12, kind: input, shape index: {}]
  %s13 = inlined_call_operand.vmem [shape: f32[1,6], index: 13, kind: input, shape index: {}]
  %s14 = inlined_call_operand.vmem [shape: f32[1,6], index: 14, kind: input, shape index: {}]
  %s15 = inlined_call_operand.vmem [shape: f32[8,6], index: 15, kind: input, shape index: {}]
  %s16 = inlined_call_operand.vmem [shape: f32[8,6], index: 16, kind: input, shape index: {}]
  %s17 = inlined_call_operand.hbm [shape: f32[1,1], index: 17, kind: output, shape index: {}]
  %s18 = sld [smem:[#allocation0]]
  $region78: #{mlp_agent_forward.1} parent=0
    _
  %s20 = ssub.s32 1, %s18
  %s21 = scalar_select 0, %s20, %s18
  $region1: #{mlp_agent_forward.1} parent=0
    #allocation2 [shape = 'u8[512]{0}', space=vmem, size = 0x400, scoped, tag = 'output window, operand 0, single buffered']
    #allocation3 [shape = 's32[1]{0}', space=sflag, size = 0x4, scoped, tag = 'scoped memory for mlp_agent_forward.1']
    %22 = vsyncpa [#allocation3], 0
    // Predicated region
    $region2: #{mlp_agent_forward.1} parent=1 // pred_check
      _
    $region3: #{mlp_agent_forward.1} parent=1 // pred_check_branch
      %24 = sbr.rel (0) target = $region5
    $region4: #{mlp_agent_forward.1} parent=1 // pred_region
      _
    $region5: #{mlp_agent_forward.1} parent=1 // pred_fallthru
      _
    // Predicated region
    $region6: #{mlp_agent_forward.1} parent=1 // pred_check
      _
    $region7: #{mlp_agent_forward.1} parent=1 // pred_check_branch
      %26 = sbr.rel (0) target = $region9
    $region8: #{mlp_agent_forward.1} parent=1 // pred_region
      _
    $region9: #{mlp_agent_forward.1} parent=1 // pred_fallthru
      _
    // Predicated region
    $region10: #{mlp_agent_forward.1} parent=1 // pred_check
      _
    $region11: #{mlp_agent_forward.1} parent=1 // pred_check_branch
      %28 = sbr.rel (0) target = $region13
    $region12: #{mlp_agent_forward.1} parent=1 // pred_region
      _
    $region13: #{mlp_agent_forward.1} parent=1 // pred_fallthru
      _
    // Predicated region
    $region14: #{mlp_agent_forward.1} parent=1 // pred_check
      _
    $region15: #{mlp_agent_forward.1} parent=1 // pred_check_branch
      %30 = sbr.rel (0) target = $region17
    $region16: #{mlp_agent_forward.1} parent=1 // pred_region
      _
    $region17: #{mlp_agent_forward.1} parent=1 // pred_fallthru
      _
    // Predicated region
    $region18: #{mlp_agent_forward.1} parent=1 // pred_check
      _
    $region19: #{mlp_agent_forward.1} parent=1 // pred_check_branch
      %32 = sbr.rel (0) target = $region21
    $region20: #{mlp_agent_forward.1} parent=1 // pred_region
      _
    $region21: #{mlp_agent_forward.1} parent=1 // pred_fallthru
      _
    // Predicated region
    $region22: #{mlp_agent_forward.1} parent=1 // pred_check
      _
    $region23: #{mlp_agent_forward.1} parent=1 // pred_check_branch
      %34 = sbr.rel (0) target = $region25
    $region24: #{mlp_agent_forward.1} parent=1 // pred_region
      _
    $region25: #{mlp_agent_forward.1} parent=1 // pred_fallthru
      _
    // Predicated region
    $region26: #{mlp_agent_forward.1} parent=1 // pred_check
      _
    $region27: #{mlp_agent_forward.1} parent=1 // pred_check_branch
      %36 = sbr.rel (0) target = $region29
    $region28: #{mlp_agent_forward.1} parent=1 // pred_region
      _
    $region29: #{mlp_agent_forward.1} parent=1 // pred_fallthru
      _
    // Predicated region
    $region30: #{mlp_agent_forward.1} parent=1 // pred_check
      _
    $region31: #{mlp_agent_forward.1} parent=1 // pred_check_branch
      %38 = sbr.rel (0) target = $region33
    $region32: #{mlp_agent_forward.1} parent=1 // pred_region
      _
    $region33: #{mlp_agent_forward.1} parent=1 // pred_fallthru
      _
    // Predicated region
    $region34: #{mlp_agent_forward.1} parent=1 // pred_check
      _
    $region35: #{mlp_agent_forward.1} parent=1 // pred_check_branch
      %40 = sbr.rel (0) target = $region37
    $region36: #{mlp_agent_forward.1} parent=1 // pred_region
      _
    $region37: #{mlp_agent_forward.1} parent=1 // pred_fallthru
      _
    // Predicated region
    $region38: #{mlp_agent_forward.1} parent=1 // pred_check
      _
    $region39: #{mlp_agent_forward.1} parent=1 // pred_check_branch
      %42 = sbr.rel (0) target = $region41
    $region40: #{mlp_agent_forward.1} parent=1 // pred_region
      _
    $region41: #{mlp_agent_forward.1} parent=1 // pred_fallthru
      _
    // Predicated region
    $region42: #{mlp_agent_forward.1} parent=1 // pred_check
      _
    $region43: #{mlp_agent_forward.1} parent=1 // pred_check_branch
      %44 = sbr.rel (0) target = $region45
    $region44: #{mlp_agent_forward.1} parent=1 // pred_region
      _
    $region45: #{mlp_agent_forward.1} parent=1 // pred_fallthru
      _
    // Predicated region
    $region46: #{mlp_agent_forward.1} parent=1 // pred_check
      _
    $region47: #{mlp_agent_forward.1} parent=1 // pred_check_branch
      %46 = sbr.rel (0) target = $region49
    $region48: #{mlp_agent_forward.1} parent=1 // pred_region
      _
    $region49: #{mlp_agent_forward.1} parent=1 // pred_fallthru
      _
    // Predicated region
    $region50: #{mlp_agent_forward.1} parent=1 // pred_check
      _
    $region51: #{mlp_agent_forward.1} parent=1 // pred_check_branch
      %48 = sbr.rel (0) target = $region53
    $region52: #{mlp_agent_forward.1} parent=1 // pred_region
      _
    $region53: #{mlp_agent_forward.1} parent=1 // pred_fallthru
      _
    // Predicated region
    $region54: #{mlp_agent_forward.1} parent=1 // pred_check
      _
    $region55: #{mlp_agent_forward.1} parent=1 // pred_check_branch
      %50 = sbr.rel (0) target = $region57
    $region56: #{mlp_agent_forward.1} parent=1 // pred_region
      _
    $region57: #{mlp_agent_forward.1} parent=1 // pred_fallthru
      _
    // Predicated region
    $region58: #{mlp_agent_forward.1} parent=1 // pred_check
      _
    $region59: #{mlp_agent_forward.1} parent=1 // pred_check_branch
      %52 = sbr.rel (0) target = $region61
    $region60: #{mlp_agent_forward.1} parent=1 // pred_region
      _
    $region61: #{mlp_agent_forward.1} parent=1 // pred_fallthru
      _
    // Predicated region
    $region62: #{mlp_agent_forward.1} parent=1 // pred_check
      _
    $region63: #{mlp_agent_forward.1} parent=1 // pred_check_branch
      %54 = sbr.rel (0) target = $region65
    $region64: #{mlp_agent_forward.1} parent=1 // pred_region
      _
    $region65: #{mlp_agent_forward.1} parent=1 // pred_fallthru
      _
    // Predicated region
    $region66: #{mlp_agent_forward.1} parent=1 // pred_check
      _
    $region67: #{mlp_agent_forward.1} parent=1 // pred_check_branch
      %56 = sbr.rel (0) target = $region69
    $region68: #{mlp_agent_forward.1} parent=1 // pred_region
      _
    $region69: #{mlp_agent_forward.1} parent=1 // pred_fallthru
      _
    %v57 = vld [vmem:[%s6] sm:$0x1]
    %v58 = vld [vmem:[%s7] sm:$0x1]
    %v59 = vld [vmem:[%s0] sm:$0xff]
    %v60 = vld [vmem:[%s0 + $0x8] sm:$0xff]
    %v61 = vld [vmem:[%s0 + $0x10] sm:$0xff]
    %v62 = vld [vmem:[%s0 + $0x18] sm:$0xff]
    %v63 = vld [vmem:[%s0 + $0x20] sm:$0xff]
    %v64 = vld [vmem:[%s0 + $0x28] sm:$0xff]
    %v65 = vld [vmem:[%s0 + $0x30] sm:$0xff]
    %v66 = vld [vmem:[%s0 + $0x38] sm:$0xff]
    %v67 = vld [vmem:[%s0 + $0x40] sm:$0xff]
    %v68 = vld [vmem:[%s0 + $0x48] sm:$0xff]
    %v69 = vld [vmem:[%s0 + $0x50] sm:$0xff]
    %v70 = vld [vmem:[%s0 + $0x58] sm:$0xff]
    %v71 = vld [vmem:[%s0 + $0x60] sm:$0xff]
    %v72 = vld [vmem:[%s0 + $0x68] sm:$0xff]
    %v73 = vld [vmem:[%s0 + $0x70] sm:$0xff]
    %v74 = vld [vmem:[%s0 + $0x78] sm:$0xff]
    %v75 = vld [vmem:[%s1] sm:$0xff]
    %v76 = vld [vmem:[%s1 + $0x8] sm:$0xff]
    %v77 = vld [vmem:[%s1 + $0x10] sm:$0xff]
    %v78 = vld [vmem:[%s1 + $0x18] sm:$0xff]
    %v79 = vld [vmem:[%s1 + $0x20] sm:$0xff]
    %v80 = vld [vmem:[%s1 + $0x28] sm:$0xff]
    %v81 = vld [vmem:[%s1 + $0x30] sm:$0xff]
    %v82 = vld [vmem:[%s1 + $0x38] sm:$0xff]
    %v83 = vld [vmem:[%s1 + $0x40] sm:$0xff]
    %v84 = vld [vmem:[%s1 + $0x48] sm:$0xff]
    %v85 = vld [vmem:[%s1 + $0x50] sm:$0xff]
    %v86 = vld [vmem:[%s1 + $0x58] sm:$0xff]
    %v87 = vld [vmem:[%s1 + $0x60] sm:$0xff]
    %v88 = vld [vmem:[%s1 + $0x68] sm:$0xff]
    %v89 = vld [vmem:[%s1 + $0x70] sm:$0xff]
    %v90 = vld [vmem:[%s1 + $0x78] sm:$0xff]
    %v91 = vld [vmem:[%s1 + $0x80] sm:$0xff]
    %v92 = vld [vmem:[%s1 + $0x88] sm:$0xff]
    %v93 = vld [vmem:[%s1 + $0x90] sm:$0xff]
    %v94 = vld [vmem:[%s1 + $0x98] sm:$0xff]
    %v95 = vld [vmem:[%s1 + $0xa0] sm:$0xff]
    %v96 = vld [vmem:[%s1 + $0xa8] sm:$0xff]
    %v97 = vld [vmem:[%s1 + $0xb0] sm:$0xff]
    %v98 = vld [vmem:[%s1 + $0xb8] sm:$0xff]
    %v99 = vld [vmem:[%s1 + $0xc0] sm:$0xff]
    %v100 = vld [vmem:[%s1 + $0xc8] sm:$0xff]
    %v101 = vld [vmem:[%s1 + $0xd0] sm:$0xff]
    %v102 = vld [vmem:[%s1 + $0xd8] sm:$0xff]
    %v103 = vld [vmem:[%s1 + $0xe0] sm:$0xff]
    %v104 = vld [vmem:[%s1 + $0xe8] sm:$0xff]
    %v105 = vld [vmem:[%s1 + $0xf0] sm:$0xff]
    %v106 = vld [vmem:[%s1 + $0xf8] sm:$0xff]
    %v107 = vld [vmem:[%s2] sm:$0x1]
    %v109 = vperm.slane %v107, 0
    %111 = vmatpush.msra.mxu0 %v90
    %112 = vmatpush.msra.mxu0 %v89
    %113 = vmatpush.msra.mxu0 %v88
    %114 = vmatpush.msra.mxu0 %v87
    %115 = vmatpush.msra.mxu0 %v86
    %116 = vmatpush.msra.mxu0 %v85
    %117 = vmatpush.msra.mxu0 %v84
    %118 = vmatpush.msra.mxu0 %v83
    %119 = vmatpush.msra.mxu0 %v82
    %120 = vmatpush.msra.mxu0 %v81
    %121 = vmatpush.msra.mxu0 %v80
    %122 = vmatpush.msra.mxu0 %v79
    %123 = vmatpush.msra.mxu0 %v78
    %124 = vmatpush.msra.mxu0 %v77
    %125 = vmatpush.msra.mxu0 %v76
    %126 = vmatpush.msra.mxu0 %v75
    %127 = vmatmul.f32.gmra.mxu0 %v59
    %v128 = vpop.f32.mrf.mxu0
    %v129 = vadd.f32 %v109, %v128
    %130 = vmatmul.f32.gmra.mxu0 %v61
    %v131 = vpop.f32.mrf.mxu0
    %v132 = vadd.f32 %v109, %v131
    %133 = vmatmul.f32.gmra.mxu0 %v63
    %v134 = vpop.f32.mrf.mxu0
    %v135 = vadd.f32 %v109, %v134
    %136 = vmatmul.f32.gmra.mxu0 %v65
    %v137 = vpop.f32.mrf.mxu0
    %v138 = vadd.f32 %v109, %v137
    %139 = vmatmul.f32.gmra.mxu0 %v67
    %v140 = vpop.f32.mrf.mxu0
    %v141 = vadd.f32 %v109, %v140
    %142 = vmatmul.f32.gmra.mxu0 %v69
    %v143 = vpop.f32.mrf.mxu0
    %v144 = vadd.f32 %v109, %v143
    %145 = vmatmul.f32.gmra.mxu0 %v71
    %v146 = vpop.f32.mrf.mxu0
    %v147 = vadd.f32 %v109, %v146
    %148 = vmatmul.f32.gmra.mxu0 %v73
    %v149 = vpop.f32.mrf.mxu0
    %v150 = vadd.f32 %v109, %v149
    %151 = vdwg.mxu0
    %152 = vmatpush.msra.mxu0 %v106
    %153 = vmatpush.msra.mxu0 %v105
    %154 = vmatpush.msra.mxu0 %v104
    %155 = vmatpush.msra.mxu0 %v103
    %156 = vmatpush.msra.mxu0 %v102
    %157 = vmatpush.msra.mxu0 %v101
    %158 = vmatpush.msra.mxu0 %v100
    %159 = vmatpush.msra.mxu0 %v99
    %160 = vmatpush.msra.mxu0 %v98
    %161 = vmatpush.msra.mxu0 %v97
    %162 = vmatpush.msra.mxu0 %v96
    %163 = vmatpush.msra.mxu0 %v95
    %164 = vmatpush.msra.mxu0 %v94
    %165 = vmatpush.msra.mxu0 %v93
    %166 = vmatpush.msra.mxu0 %v92
    %167 = vmatpush.msra.mxu0 %v91
    %168 = vmatmul.f32.gmra.mxu0 %v60
    %v169 = vpop.f32.mrf.mxu0
    %v170 = vadd.f32 %v129, %v169
    %171 = vmatmul.f32.gmra.mxu0 %v62
    %v172 = vpop.f32.mrf.mxu0
    %v173 = vadd.f32 %v132, %v172
    %174 = vmatmul.f32.gmra.mxu0 %v64
    %v175 = vpop.f32.mrf.mxu0
    %v176 = vadd.f32 %v135, %v175
    %177 = vmatmul.f32.gmra.mxu0 %v66
    %v178 = vpop.f32.mrf.mxu0
    %v179 = vadd.f32 %v138, %v178
    %180 = vmatmul.f32.gmra.mxu0 %v68
    %v181 = vpop.f32.mrf.mxu0
    %v182 = vadd.f32 %v141, %v181
    %183 = vmatmul.f32.gmra.mxu0 %v70
    %v184 = vpop.f32.mrf.mxu0
    %v185 = vadd.f32 %v144, %v184
    %186 = vmatmul.f32.gmra.mxu0 %v72
    %v187 = vpop.f32.mrf.mxu0
    %v188 = vadd.f32 %v147, %v187
    %189 = vmatmul.f32.gmra.mxu0 %v74
    %v190 = vpop.f32.mrf.mxu0
    %v191 = vadd.f32 %v150, %v190
    %192 = vdwg.mxu0
    %v193 = vld [vmem:[%s3] sm:$0xff]
    %v194 = vld [vmem:[%s4] sm:$0xff]
    %v195 = vld [vmem:[%s5] sm:$0x1]
    %v197 = vperm.slane %v195, 0
    %vm199 = vcmask 64512
    %v201 = vsel %vm199, %v193, 0
    %203 = vmatpush.msra.mxu0 0.0
    %204 = vmatpush.msra.mxu0 0.0
    %205 = vmatpush.msra.mxu0 0.0
    %206 = vmatpush.msra.mxu0 0.0
    %207 = vmatpush.msra.mxu0 0.0
    %208 = vmatpush.msra.mxu0 0.0
    %209 = vmatpush.msra.mxu0 0.0
    %210 = vmatpush.msra.mxu0 0.0
    %211 = vmatpush.msra.mxu0 0.0
    %212 = vmatpush.msra.mxu0 0.0
    %213 = vmatpush.msra.mxu0 0.0
    %214 = vmatpush.msra.mxu0 0.0
    %215 = vmatpush.msra.mxu0 0.0
    %216 = vmatpush.msra.mxu0 0.0
    %217 = vmatpush.msra.mxu0 0.0
    %218 = vmatpush.msra.mxu0 %v194
    %219 = vmatmul.f32.gmra.mxu0 %v201
    %v220 = vpop.f32.mrf.mxu0
    %v221 = vadd.f32 %v197, %v220
    %222 = vdwg.mxu0
    %vm223 = vcmask 261120
    %v224 = vsel %vm223, %v170, 0.0
    %225 = vadd.xlane.f32.xlu0 %v224
    %v226 = vpop.xlane.xlu0 %225
    %v227 = vsel %vm223, %v173, 0.0
    %228 = vadd.xlane.f32.xlu0 %v227
    %v229 = vpop.xlane.xlu0 %228
    %v230 = vsel %vm223, %v176, 0.0
    %231 = vadd.xlane.f32.xlu0 %v230
    %v232 = vpop.xlane.xlu0 %231
    %v233 = vsel %vm223, %v179, 0.0
    %234 = vadd.xlane.f32.xlu0 %v233
    %v235 = vpop.xlane.xlu0 %234
    %v236 = vsel %vm223, %v182, 0.0
    %237 = vadd.xlane.f32.xlu0 %v236
    %v238 = vpop.xlane.xlu0 %237
    %v239 = vsel %vm223, %v185, 0.0
    %240 = vadd.xlane.f32.xlu0 %v239
    %v241 = vpop.xlane.xlu0 %240
    %v242 = vsel %vm223, %v188, 0.0
    %243 = vadd.xlane.f32.xlu0 %v242
    %v244 = vpop.xlane.xlu0 %243
    %v245 = vsel %vm223, %v191, 0.0
    %246 = vadd.xlane.f32.xlu0 %v245
    %v247 = vpop.xlane.xlu0 %246
    %v248 = vrcp.pop 32.0
    %v249 = vmul.f32 32.0, %v248
    %v250 = vsub.f32 1.0, %v249
    %v251 = vmul.f32 %v248, %v250
    %v252 = vadd.f32 %v248, %v251
    %vm253 = vweird.f32 %v248
    %v254 = vsel %vm253, %v248, %v252
    %v255 = vmul.f32 %v226, %v254
    %v256 = vmul.f32 %v229, %v254
    %v257 = vmul.f32 %v232, %v254
    %v258 = vmul.f32 %v235, %v254
    %v259 = vmul.f32 %v238, %v254
    %v260 = vmul.f32 %v241, %v254
    %v261 = vmul.f32 %v244, %v254
    %v262 = vmul.f32 %v247, %v254
    %v263 = vsub.f32 %v170, %v255
    %v264 = vsub.f32 %v173, %v256
    %v265 = vsub.f32 %v176, %v257
    %v266 = vsub.f32 %v179, %v258
    %v267 = vsub.f32 %v182, %v259
    %v268 = vsub.f32 %v185, %v260
    %v269 = vsub.f32 %v188, %v261
    %v270 = vsub.f32 %v191, %v262
    %v271 = vmul.f32 %v263, %v263
    %v272 = vmul.f32 %v264, %v264
    %v273 = vmul.f32 %v265, %v265
    %v274 = vmul.f32 %v266, %v266
    %v275 = vmul.f32 %v267, %v267
    %v276 = vmul.f32 %v268, %v268
    %v277 = vmul.f32 %v269, %v269
    %v278 = vmul.f32 %v270, %v270
    %v279 = vsel %vm223, %v271, 0.0
    %280 = vadd.xlane.f32.xlu0 %v279
    %v281 = vpop.xlane.xlu0 %280
    %v282 = vsel %vm223, %v272, 0.0
    %283 = vadd.xlane.f32.xlu0 %v282
    %v284 = vpop.xlane.xlu0 %283
    %v285 = vsel %vm223, %v273, 0.0
    %286 = vadd.xlane.f32.xlu0 %v285
    %v287 = vpop.xlane.xlu0 %286
    %v288 = vsel %vm223, %v274, 0.0
    %289 = vadd.xlane.f32.xlu0 %v288
    %v290 = vpop.xlane.xlu0 %289
    %v291 = vsel %vm223, %v275, 0.0
    %292 = vadd.xlane.f32.xlu0 %v291
    %v293 = vpop.xlane.xlu0 %292
    %v294 = vsel %vm223, %v276, 0.0
    %295 = vadd.xlane.f32.xlu0 %v294
    %v296 = vpop.xlane.xlu0 %295
    %v297 = vsel %vm223, %v277, 0.0
    %298 = vadd.xlane.f32.xlu0 %v297
    %v299 = vpop.xlane.xlu0 %298
    %v300 = vsel %vm223, %v278, 0.0
    %301 = vadd.xlane.f32.xlu0 %v300
    %v302 = vpop.xlane.xlu0 %301
    %v303 = vmul.f32 %v281, %v254
    %v304 = vmul.f32 %v284, %v254
    %v305 = vmul.f32 %v287, %v254
    %v306 = vmul.f32 %v290, %v254
    %v307 = vmul.f32 %v293, %v254
    %v308 = vmul.f32 %v296, %v254
    %v309 = vmul.f32 %v299, %v254
    %v310 = vmul.f32 %v302, %v254
    %v311 = vadd.f32 %v303, 1e-05
    %v312 = vadd.f32 %v304, 1e-05
    %v313 = vadd.f32 %v305, 1e-05
    %v314 = vadd.f32 %v306, 1e-05
    %v315 = vadd.f32 %v307, 1e-05
    %v316 = vadd.f32 %v308, 1e-05
    %v317 = vadd.f32 %v309, 1e-05
    %v318 = vadd.f32 %v310, 1e-05
    %v319 = vrsqrt.pop %v311
    %v320 = vmul.f32 %v319, %v311
    %v321 = vmul.f32 %v320, %v319
    %v322 = vmul.f32 0.5, %v321
    %v323 = vsub.f32 1.5, %v322
    %v324 = vmul.f32 %v319, %v323
    %vm325 = vweird.f32 %v311
    %vm326 = vweird.f32 %v319
    %vm327 = vmor %vm325, %vm326
    %v328 = vsel %vm327, %v319, %v324
    %v329 = vrsqrt.pop %v312
    %v330 = vmul.f32 %v329, %v312
    %v331 = vmul.f32 %v330, %v329
    %v332 = vmul.f32 0.5, %v331
    %v333 = vsub.f32 1.5, %v332
    %v334 = vmul.f32 %v329, %v333
    %vm335 = vweird.f32 %v312
    %vm336 = vweird.f32 %v329
    %vm337 = vmor %vm335, %vm336
    %v338 = vsel %vm337, %v329, %v334
    %v339 = vrsqrt.pop %v313
    %v340 = vmul.f32 %v339, %v313
    %v341 = vmul.f32 %v340, %v339
    %v342 = vmul.f32 0.5, %v341
    %v343 = vsub.f32 1.5, %v342
    %v344 = vmul.f32 %v339, %v343
    %vm345 = vweird.f32 %v313
    %vm346 = vweird.f32 %v339
    %vm347 = vmor %vm345, %vm346
    %v348 = vsel %vm347, %v339, %v344
    %v349 = vrsqrt.pop %v314
    %v350 = vmul.f32 %v349, %v314
    %v351 = vmul.f32 %v350, %v349
    %v352 = vmul.f32 0.5, %v351
    %v353 = vsub.f32 1.5, %v352
    %v354 = vmul.f32 %v349, %v353
    %vm355 = vweird.f32 %v314
    %vm356 = vweird.f32 %v349
    %vm357 = vmor %vm355, %vm356
    %v358 = vsel %vm357, %v349, %v354
    %v359 = vrsqrt.pop %v315
    %v360 = vmul.f32 %v359, %v315
    %v361 = vmul.f32 %v360, %v359
    %v362 = vmul.f32 0.5, %v361
    %v363 = vsub.f32 1.5, %v362
    %v364 = vmul.f32 %v359, %v363
    %vm365 = vweird.f32 %v315
    %vm366 = vweird.f32 %v359
    %vm367 = vmor %vm365, %vm366
    %v368 = vsel %vm367, %v359, %v364
    %v369 = vrsqrt.pop %v316
    %v370 = vmul.f32 %v369, %v316
    %v371 = vmul.f32 %v370, %v369
    %v372 = vmul.f32 0.5, %v371
    %v373 = vsub.f32 1.5, %v372
    %v374 = vmul.f32 %v369, %v373
    %vm375 = vweird.f32 %v316
    %vm376 = vweird.f32 %v369
    %vm377 = vmor %vm375, %vm376
    %v378 = vsel %vm377, %v369, %v374
    %v379 = vrsqrt.pop %v317
    %v380 = vmul.f32 %v379, %v317
    %v381 = vmul.f32 %v380, %v379
    %v382 = vmul.f32 0.5, %v381
    %v383 = vsub.f32 1.5, %v382
    %v384 = vmul.f32 %v379, %v383
    %vm385 = vweird.f32 %v317
    %vm386 = vweird.f32 %v379
    %vm387 = vmor %vm385, %vm386
    %v388 = vsel %vm387, %v379, %v384
    %v389 = vrsqrt.pop %v318
    %v390 = vmul.f32 %v389, %v318
    %v391 = vmul.f32 %v390, %v389
    %v392 = vmul.f32 0.5, %v391
    %v393 = vsub.f32 1.5, %v392
    %v394 = vmul.f32 %v389, %v393
    %vm395 = vweird.f32 %v318
    %vm396 = vweird.f32 %v389
    %vm397 = vmor %vm395, %vm396
    %v398 = vsel %vm397, %v389, %v394
    %v399 = vmul.f32 %v263, %v328
    %v400 = vmul.f32 %v264, %v338
    %v401 = vmul.f32 %v265, %v348
    %v402 = vmul.f32 %v266, %v358
    %v403 = vmul.f32 %v267, %v368
    %v404 = vmul.f32 %v268, %v378
    %v405 = vmul.f32 %v269, %v388
    %v406 = vmul.f32 %v270, %v398
    %v408 = vperm.slane %v57, 0
    %v410 = vmul.f32 %v399, %v408
    %v411 = vmul.f32 %v400, %v408
    %v412 = vmul.f32 %v401, %v408
    %v413 = vmul.f32 %v402, %v408
    %v414 = vmul.f32 %v403, %v408
    %v415 = vmul.f32 %v404, %v408
    %v416 = vmul.f32 %v405, %v408
    %v417 = vmul.f32 %v406, %v408
    %v419 = vperm.slane %v58, 0
    %v421 = vadd.f32 %v410, %v419
    %v422 = vadd.f32 %v411, %v419
    %v423 = vadd.f32 %v412, %v419
    %v424 = vadd.f32 %v413, %v419
    %v425 = vadd.f32 %v414, %v419
    %v426 = vadd.f32 %v415, %v419
    %v427 = vadd.f32 %v416, %v419
    %v428 = vadd.f32 %v417, %v419
    %v429 = vsel %vm223, %v221, 0.0
    %430 = vadd.xlane.f32.xlu0 %v429
    %v431 = vpop.xlane.xlu0 %430
    %v432 = vmul.f32 %v431, %v254
    %v433 = vsub.f32 %v221, %v432
    %v434 = vmul.f32 %v433, %v433
    %v435 = vsel %vm223, %v434, 0.0
    %436 = vadd.xlane.f32.xlu0 %v435
    %v437 = vpop.xlane.xlu0 %436
    %v438 = vmul.f32 %v437, %v254
    %v439 = vadd.f32 %v438, 1e-05
    %v440 = vrsqrt.pop %v439
    %v441 = vmul.f32 %v440, %v439
    %v442 = vmul.f32 %v441, %v440
    %v443 = vmul.f32 0.5, %v442
    %v444 = vsub.f32 1.5, %v443
    %v445 = vmul.f32 %v440, %v444
    %vm446 = vweird.f32 %v439
    %vm447 = vweird.f32 %v440
    %vm448 = vmor %vm446, %vm447
    %v449 = vsel %vm448, %v440, %v445
    %v450 = vmul.f32 %v433, %v449
    %v451 = vmul.f32 %v450, %v408
    %v452 = vadd.f32 %v451, %v419
    %v453 = vld [vmem:[%s8 + $0x100] sm:$0xff]
    %v454 = vld [vmem:[%s8 + $0x108] sm:$0xff]
    %v455 = vld [vmem:[%s8 + $0x110] sm:$0xff]
    %v456 = vld [vmem:[%s8 + $0x118] sm:$0xff]
    %v457 = vld [vmem:[%s9] sm:$0x1]
    %v459 = vperm.slane %v457, 0
    %v462 = vsel %vm223, %v452, 0
    %464 = vmatpush.msra.mxu0 0.0
    %465 = vmatpush.msra.mxu0 0.0
    %466 = vmatpush.msra.mxu0 0.0
    %467 = vmatpush.msra.mxu0 0.0
    %468 = vmatpush.msra.mxu0 0.0
    %469 = vmatpush.msra.mxu0 0.0
    %470 = vmatpush.msra.mxu0 0.0
    %471 = vmatpush.msra.mxu0 0.0
    %472 = vmatpush.msra.mxu0 0.0
    %473 = vmatpush.msra.mxu0 0.0
    %474 = vmatpush.msra.mxu0 0.0
    %475 = vmatpush.msra.mxu0 0.0
    %476 = vmatpush.msra.mxu0 %v456
    %477 = vmatpush.msra.mxu0 %v455
    %478 = vmatpush.msra.mxu0 %v454
    %479 = vmatpush.msra.mxu0 %v453
    %480 = vmatmul.f32.gmra.mxu0 %v462
    %v481 = vpop.f32.mrf.mxu0
    %v482 = vadd.f32 %v459, %v481
    %483 = vdwg.mxu0
    %v484 = vld [vmem:[%s8] sm:$0xff]
    %v485 = vld [vmem:[%s8 + $0x8] sm:$0xff]
    %v486 = vld [vmem:[%s8 + $0x10] sm:$0xff]
    %v487 = vld [vmem:[%s8 + $0x18] sm:$0xff]
    %v489 = vsel %vm223, %v421, 0
    %491 = vmatpush.msra.mxu0 0.0
    %492 = vmatpush.msra.mxu0 0.0
    %493 = vmatpush.msra.mxu0 0.0
    %494 = vmatpush.msra.mxu0 0.0
    %495 = vmatpush.msra.mxu0 0.0
    %496 = vmatpush.msra.mxu0 0.0
    %497 = vmatpush.msra.mxu0 0.0
    %498 = vmatpush.msra.mxu0 0.0
    %499 = vmatpush.msra.mxu0 0.0
    %500 = vmatpush.msra.mxu0 0.0
    %501 = vmatpush.msra.mxu0 0.0
    %502 = vmatpush.msra.mxu0 0.0
    %503 = vmatpush.msra.mxu0 %v487
    %504 = vmatpush.msra.mxu0 %v486
    %505 = vmatpush.msra.mxu0 %v485
    %506 = vmatpush.msra.mxu0 %v484
    %507 = vmatmul.f32.gmra.mxu0 %v489
    %v508 = vpop.f32.mrf.mxu0
    %v509 = vadd.f32 0.0, %v508
    %510 = vdwg.mxu0
    %v511 = vadd.f32 %v482, %v509
    %v512 = vld [vmem:[%s8 + $0x20] sm:$0xff]
    %v513 = vld [vmem:[%s8 + $0x28] sm:$0xff]
    %v514 = vld [vmem:[%s8 + $0x30] sm:$0xff]
    %v515 = vld [vmem:[%s8 + $0x38] sm:$0xff]
    %v517 = vsel %vm223, %v422, 0
    %519 = vmatpush.msra.mxu0 0.0
    %520 = vmatpush.msra.mxu0 0.0
    %521 = vmatpush.msra.mxu0 0.0
    %522 = vmatpush.msra.mxu0 0.0
    %523 = vmatpush.msra.mxu0 0.0
    %524 = vmatpush.msra.mxu0 0.0
    %525 = vmatpush.msra.mxu0 0.0
    %526 = vmatpush.msra.mxu0 0.0
    %527 = vmatpush.msra.mxu0 0.0
    %528 = vmatpush.msra.mxu0 0.0
    %529 = vmatpush.msra.mxu0 0.0
    %530 = vmatpush.msra.mxu0 0.0
    %531 = vmatpush.msra.mxu0 %v515
    %532 = vmatpush.msra.mxu0 %v514
    %533 = vmatpush.msra.mxu0 %v513
    %534 = vmatpush.msra.mxu0 %v512
    %535 = vmatmul.f32.gmra.mxu0 %v517
    %v536 = vpop.f32.mrf.mxu0
    %v537 = vadd.f32 0.0, %v536
    %538 = vdwg.mxu0
    %v539 = vadd.f32 %v511, %v537
    %v540 = vld [vmem:[%s8 + $0x40] sm:$0xff]
    %v541 = vld [vmem:[%s8 + $0x48] sm:$0xff]
    %v542 = vld [vmem:[%s8 + $0x50] sm:$0xff]
    %v543 = vld [vmem:[%s8 + $0x58] sm:$0xff]
    %v545 = vsel %vm223, %v423, 0
    %547 = vmatpush.msra.mxu0 0.0
    %548 = vmatpush.msra.mxu0 0.0
    %549 = vmatpush.msra.mxu0 0.0
    %550 = vmatpush.msra.mxu0 0.0
    %551 = vmatpush.msra.mxu0 0.0
    %552 = vmatpush.msra.mxu0 0.0
    %553 = vmatpush.msra.mxu0 0.0
    %554 = vmatpush.msra.mxu0 0.0
    %555 = vmatpush.msra.mxu0 0.0
    %556 = vmatpush.msra.mxu0 0.0
    %557 = vmatpush.msra.mxu0 0.0
    %558 = vmatpush.msra.mxu0 0.0
    %559 = vmatpush.msra.mxu0 %v543
    %560 = vmatpush.msra.mxu0 %v542
    %561 = vmatpush.msra.mxu0 %v541
    %562 = vmatpush.msra.mxu0 %v540
    %563 = vmatmul.f32.gmra.mxu0 %v545
    %v564 = vpop.f32.mrf.mxu0
    %v565 = vadd.f32 0.0, %v564
    %566 = vdwg.mxu0
    %v567 = vadd.f32 %v539, %v565
    %v568 = vld [vmem:[%s8 + $0x60] sm:$0xff]
    %v569 = vld [vmem:[%s8 + $0x68] sm:$0xff]
    %v570 = vld [vmem:[%s8 + $0x70] sm:$0xff]
    %v571 = vld [vmem:[%s8 + $0x78] sm:$0xff]
    %v573 = vsel %vm223, %v424, 0
    %575 = vmatpush.msra.mxu0 0.0
    %576 = vmatpush.msra.mxu0 0.0
    %577 = vmatpush.msra.mxu0 0.0
    %578 = vmatpush.msra.mxu0 0.0
    %579 = vmatpush.msra.mxu0 0.0
    %580 = vmatpush.msra.mxu0 0.0
    %581 = vmatpush.msra.mxu0 0.0
    %582 = vmatpush.msra.mxu0 0.0
    %583 = vmatpush.msra.mxu0 0.0
    %584 = vmatpush.msra.mxu0 0.0
    %585 = vmatpush.msra.mxu0 0.0
    %586 = vmatpush.msra.mxu0 0.0
    %587 = vmatpush.msra.mxu0 %v571
    %588 = vmatpush.msra.mxu0 %v570
    %589 = vmatpush.msra.mxu0 %v569
    %590 = vmatpush.msra.mxu0 %v568
    %591 = vmatmul.f32.gmra.mxu0 %v573
    %v592 = vpop.f32.mrf.mxu0
    %v593 = vadd.f32 0.0, %v592
    %594 = vdwg.mxu0
    %v595 = vadd.f32 %v567, %v593
    %v596 = vld [vmem:[%s8 + $0x80] sm:$0xff]
    %v597 = vld [vmem:[%s8 + $0x88] sm:$0xff]
    %v598 = vld [vmem:[%s8 + $0x90] sm:$0xff]
    %v599 = vld [vmem:[%s8 + $0x98] sm:$0xff]
    %v601 = vsel %vm223, %v425, 0
    %603 = vmatpush.msra.mxu0 0.0
    %604 = vmatpush.msra.mxu0 0.0
    %605 = vmatpush.msra.mxu0 0.0
    %606 = vmatpush.msra.mxu0 0.0
    %607 = vmatpush.msra.mxu0 0.0
    %608 = vmatpush.msra.mxu0 0.0
    %609 = vmatpush.msra.mxu0 0.0
    %610 = vmatpush.msra.mxu0 0.0
    %611 = vmatpush.msra.mxu0 0.0
    %612 = vmatpush.msra.mxu0 0.0
    %613 = vmatpush.msra.mxu0 0.0
    %614 = vmatpush.msra.mxu0 0.0
    %615 = vmatpush.msra.mxu0 %v599
    %616 = vmatpush.msra.mxu0 %v598
    %617 = vmatpush.msra.mxu0 %v597
    %618 = vmatpush.msra.mxu0 %v596
    %619 = vmatmul.f32.gmra.mxu0 %v601
    %v620 = vpop.f32.mrf.mxu0
    %v621 = vadd.f32 0.0, %v620
    %622 = vdwg.mxu0
    %v623 = vadd.f32 %v595, %v621
    %v624 = vld [vmem:[%s8 + $0xa0] sm:$0xff]
    %v625 = vld [vmem:[%s8 + $0xa8] sm:$0xff]
    %v626 = vld [vmem:[%s8 + $0xb0] sm:$0xff]
    %v627 = vld [vmem:[%s8 + $0xb8] sm:$0xff]
    %v629 = vsel %vm223, %v426, 0
    %631 = vmatpush.msra.mxu0 0.0
    %632 = vmatpush.msra.mxu0 0.0
    %633 = vmatpush.msra.mxu0 0.0
    %634 = vmatpush.msra.mxu0 0.0
    %635 = vmatpush.msra.mxu0 0.0
    %636 = vmatpush.msra.mxu0 0.0
    %637 = vmatpush.msra.mxu0 0.0
    %638 = vmatpush.msra.mxu0 0.0
    %639 = vmatpush.msra.mxu0 0.0
    %640 = vmatpush.msra.mxu0 0.0
    %641 = vmatpush.msra.mxu0 0.0
    %642 = vmatpush.msra.mxu0 0.0
    %643 = vmatpush.msra.mxu0 %v627
    %644 = vmatpush.msra.mxu0 %v626
    %645 = vmatpush.msra.mxu0 %v625
    %646 = vmatpush.msra.mxu0 %v624
    %647 = vmatmul.f32.gmra.mxu0 %v629
    %v648 = vpop.f32.mrf.mxu0
    %v649 = vadd.f32 0.0, %v648
    %650 = vdwg.mxu0
    %v651 = vadd.f32 %v623, %v649
    %v652 = vld [vmem:[%s8 + $0xc0] sm:$0xff]
    %v653 = vld [vmem:[%s8 + $0xc8] sm:$0xff]
    %v654 = vld [vmem:[%s8 + $0xd0] sm:$0xff]
    %v655 = vld [vmem:[%s8 + $0xd8] sm:$0xff]
    %v657 = vsel %vm223, %v427, 0
    %659 = vmatpush.msra.mxu0 0.0
    %660 = vmatpush.msra.mxu0 0.0
    %661 = vmatpush.msra.mxu0 0.0
    %662 = vmatpush.msra.mxu0 0.0
    %663 = vmatpush.msra.mxu0 0.0
    %664 = vmatpush.msra.mxu0 0.0
    %665 = vmatpush.msra.mxu0 0.0
    %666 = vmatpush.msra.mxu0 0.0
    %667 = vmatpush.msra.mxu0 0.0
    %668 = vmatpush.msra.mxu0 0.0
    %669 = vmatpush.msra.mxu0 0.0
    %670 = vmatpush.msra.mxu0 0.0
    %671 = vmatpush.msra.mxu0 %v655
    %672 = vmatpush.msra.mxu0 %v654
    %673 = vmatpush.msra.mxu0 %v653
    %674 = vmatpush.msra.mxu0 %v652
    %675 = vmatmul.f32.gmra.mxu0 %v657
    %v676 = vpop.f32.mrf.mxu0
    %v677 = vadd.f32 0.0, %v676
    %678 = vdwg.mxu0
    %v679 = vadd.f32 %v651, %v677
    %v680 = vld [vmem:[%s8 + $0xe0] sm:$0xff]
    %v681 = vld [vmem:[%s8 + $0xe8] sm:$0xff]
    %v682 = vld [vmem:[%s8 + $0xf0] sm:$0xff]
    %v683 = vld [vmem:[%s8 + $0xf8] sm:$0xff]
    %v685 = vsel %vm223, %v428, 0
    %687 = vmatpush.msra.mxu0 0.0
    %688 = vmatpush.msra.mxu0 0.0
    %689 = vmatpush.msra.mxu0 0.0
    %690 = vmatpush.msra.mxu0 0.0
    %691 = vmatpush.msra.mxu0 0.0
    %692 = vmatpush.msra.mxu0 0.0
    %693 = vmatpush.msra.mxu0 0.0
    %694 = vmatpush.msra.mxu0 0.0
    %695 = vmatpush.msra.mxu0 0.0
    %696 = vmatpush.msra.mxu0 0.0
    %697 = vmatpush.msra.mxu0 0.0
    %698 = vmatpush.msra.mxu0 0.0
    %699 = vmatpush.msra.mxu0 %v683
    %700 = vmatpush.msra.mxu0 %v682
    %701 = vmatpush.msra.mxu0 %v681
    %702 = vmatpush.msra.mxu0 %v680
    %703 = vmatmul.f32.gmra.mxu0 %v685
    %v704 = vpop.f32.mrf.mxu0
    %v705 = vadd.f32 0.0, %v704
    %706 = vdwg.mxu0
    %v707 = vadd.f32 %v679, %v705
    %v708 = vmax.f32 %v707, 0.0
    %v709 = vld [vmem:[%s10] sm:$0xff]
    %v710 = vld [vmem:[%s10 + $0x8] sm:$0xff]
    %v711 = vld [vmem:[%s10 + $0x10] sm:$0xff]
    %v712 = vld [vmem:[%s10 + $0x18] sm:$0xff]
    %v713 = vld [vmem:[%s10 + $0x20] sm:$0xff]
    %v714 = vld [vmem:[%s10 + $0x28] sm:$0xff]
    %v715 = vld [vmem:[%s10 + $0x30] sm:$0xff]
    %v716 = vld [vmem:[%s10 + $0x38] sm:$0xff]
    %v717 = vld [vmem:[%s11] sm:$0x1]
    %v719 = vperm.slane %v717, 0
    %vm721 = vcmask 523264
    %v723 = vsel %vm721, %v708, 0
    %725 = vmatpush.msra.mxu0 0.0
    %726 = vmatpush.msra.mxu0 0.0
    %727 = vmatpush.msra.mxu0 0.0
    %728 = vmatpush.msra.mxu0 0.0
    %729 = vmatpush.msra.mxu0 0.0
    %730 = vmatpush.msra.mxu0 0.0
    %731 = vmatpush.msra.mxu0 0.0
    %732 = vmatpush.msra.mxu0 0.0
    %733 = vmatpush.msra.mxu0 %v716
    %734 = vmatpush.msra.mxu0 %v715
    %735 = vmatpush.msra.mxu0 %v714
    %736 = vmatpush.msra.mxu0 %v713
    %737 = vmatpush.msra.mxu0 %v712
    %738 = vmatpush.msra.mxu0 %v711
    %739 = vmatpush.msra.mxu0 %v710
    %740 = vmatpush.msra.mxu0 %v709
    %741 = vmatmul.f32.gmra.mxu0 %v723
    %v742 = vpop.f32.mrf.mxu0
    %v743 = vadd.f32 %v719, %v742
    %744 = vdwg.mxu0
    %v745 = vmax.f32 %v743, 0.0
    %v746 = vld [vmem:[%s12] sm:$0xff]
    %v747 = vld [vmem:[%s12 + $0x8] sm:$0xff]
    %v748 = vld [vmem:[%s12 + $0x10] sm:$0xff]
    %v749 = vld [vmem:[%s12 + $0x18] sm:$0xff]
    %v750 = vld [vmem:[%s13] sm:$0x1]
    %v752 = vperm.slane %v750, 0
    %v755 = vsel %vm223, %v745, 0
    %757 = vmatpush.msra.mxu0 0.0
    %758 = vmatpush.msra.mxu0 0.0
    %759 = vmatpush.msra.mxu0 0.0
    %760 = vmatpush.msra.mxu0 0.0
    %761 = vmatpush.msra.mxu0 0.0
    %762 = vmatpush.msra.mxu0 0.0
    %763 = vmatpush.msra.mxu0 0.0
    %764 = vmatpush.msra.mxu0 0.0
    %765 = vmatpush.msra.mxu0 0.0
    %766 = vmatpush.msra.mxu0 0.0
    %767 = vmatpush.msra.mxu0 0.0
    %768 = vmatpush.msra.mxu0 0.0
    %769 = vmatpush.msra.mxu0 %v749
    %770 = vmatpush.msra.mxu0 %v748
    %771 = vmatpush.msra.mxu0 %v747
    %772 = vmatpush.msra.mxu0 %v746
    %773 = vmatmul.f32.gmra.mxu0 %v755
    %v774 = vpop.f32.mrf.mxu0
    %v775 = vadd.f32 %v752, %v774
    %776 = vdwg.mxu0
    %v777 = vld [vmem:[%s14] sm:$0x1]
    %v778 = vld [vmem:[%s15] sm:$0xff]
    %v779 = vsub.f32 %v778, %v775
    %v780 = vsub.f32 0.0, %v777
    %v781 = vmul.f32 %v780, 1.442695
    %v782 = vpow.pop %v781
    %v784 = vperm.slane %v782, 0
    %v786 = vmul.f32 %v779, %v784
    %v787 = vmul.f32 %v786, -0.5
    %v788 = vmul.f32 %v787, %v786
    %v790 = vperm.slane %v777, 0
    %v792 = vsub.f32 %v788, %v790
    %v793 = vsub.f32 %v792, 0.9189385
    %v794 = vld [vmem:[%s16] sm:$0xff]
    %v795 = vmul.f32 %v793, %v794
    %vm796 = vcmask 48128
    %v797 = vsel %vm796, %v795, 0.0
    %798 = vadd.xlane.f32.xlu0 %v797
    %v799 = vpop.xlane.xlu0 %798
    %v800 = vrot.slane %v799, 4
    %v801 = vadd.f32 %v799, %v800
    %v802 = vrot.slane %v801, 2
    %v803 = vadd.f32 %v801, %v802
    %v804 = vrot.slane %v803, 1
    %v805 = vadd.f32 %v803, %v804
    %s806 = vtos %v805
    %v807 = vsel %vm796, %v794, 0.0
    %808 = vadd.xlane.f32.xlu0 %v807
    %v809 = vpop.xlane.xlu0 %808
    %v810 = vrot.slane %v809, 4
    %v811 = vadd.f32 %v809, %v810
    %v812 = vrot.slane %v811, 2
    %v813 = vadd.f32 %v811, %v812
    %v814 = vrot.slane %v813, 1
    %v815 = vadd.f32 %v813, %v814
    %s816 = vtos %v815
    %v817 = vstv %s816
    %v818 = vrcp.pop %v817
    %v819 = vmul.f32 %v817, %v818
    %v820 = vsub.f32 1.0, %v819
    %v821 = vmul.f32 %v818, %v820
    %v822 = vadd.f32 %v818, %v821
    %vm823 = vweird.f32 %v817
    %vm824 = vweird.f32 %v818
    %vm825 = vmor %vm823, %vm824
    %v826 = vsel %vm825, %v818, %v822
    %v827 = vand.u32 2147483647, %v817
    %vm828 = vcmp.eq.f32.partialorder %v827, 8.507059e+37
    %v829 = vand.u32 %v817, 2147483648
    %v830 = vor.u32 1.1754944e-38, %v829
    %v831 = vsel %vm828, %v830, %v826
    %s832 = vtos %v831
    %s833 = smul.f32 %s806, %s832
    %s834 = ssub.f32 0.0, %s833
    %v835 = vstv %s834
    %vm836 = vcmask 0
    %837 = vst.msk [vmem:[#allocation2] sm:$0x1] %vm836, %v835
    // Predicated region
    $region70: #{mlp_agent_forward.1} parent=1 // pred_check
      _
    $region71: #{mlp_agent_forward.1} parent=1 // pred_check_branch
      %839 = sbr.rel (0) target = $region73
    $region72: #{mlp_agent_forward.1} parent=1 // pred_region
      %841 = vsyncadd [#allocation3], 0
      %s843 = sshll.u32 [#allocation2], 4
      %s844 = int_to_ptr.vmem [resolvable:$true] %s843
      %s845 = sshll.u32 %s17, 4
      %s846 = int_to_ptr.hbm [resolvable:$true] %s845
      %848 = dma.vmem_to_hbm [thread:$0]  %s844, 16, %s846, [#allocation3]
    $region73: #{mlp_agent_forward.1} parent=1 // pred_fallthru
      _
    // Predicated region
    $region74: #{mlp_agent_forward.1} parent=1 // pred_check
      _
    $region75: #{mlp_agent_forward.1} parent=1 // pred_check_branch
      %850 = sbr.rel (0) target = $region77
    $region76: #{mlp_agent_forward.1} parent=1 // pred_region
      %852 = dma.done [#allocation3], 16
    $region77: #{mlp_agent_forward.1} parent=1 // pred_fallthru
      _
    %853 = vsyncpa [#allocation3], 1

</llo_original>
